<compile_context>
chip_gen: v7x
topology: tpu7x:2x2x1
jax: 0.10.0
libtpu: 0.0.40
codegen_flags: <defaults>
</compile_context>

<pallas_src>
import math
from typing import Optional

import numpy as np
import jax
import jax.numpy as jnp
from jax.experimental import pallas as pl
from jax.experimental.pallas import tpu as pltpu


# --------------------------------------------------------------------------- #
# Pallas: apply the transform to the selected samples only                     #
# --------------------------------------------------------------------------- #
def _random_apply_impl(x: jax.Array, indices: jax.Array) -> jax.Array:
    """Apply the (representative) transform to x[indices], pass the rest through.

    x       : (B, C, H, W) image batch (any float or int dtype)
    indices : int32 array (num_transform,) of unique batch indices to transform.
    """
    orig_shape = x.shape
    B = x.shape[0]
    dtype = x.dtype
    itemsize = jnp.dtype(dtype).itemsize

    # Flatten each sample to a lane-dense (rows, 128) view.
    F = 1
    for d in x.shape[1:]:
        F *= d
    x2 = x.reshape(B, F)
    Fp = ((F + 127) // 128) * 128
    if Fp != F:
        # TODO(synk): padding copies the batch once; typical C*H*W (e.g.
        # 3*224*224) is already a multiple of 128 so this path is rare.
        x2 = jnp.pad(x2, ((0, 0), (0, Fp - F)))
    R = Fp // 128
    x3 = x2.reshape(B, R, 128)

    # ~512 KiB per block (f32: 1024 rows x 128 lanes).  Double-buffered in+out
    # stays ~2 MiB of VMEM -> safe on v5e/v6e/v7x default scoped limits.
    target_rows = max(8, (512 * 1024) // (128 * itemsize))
    if R <= target_rows:
        tile_rows = R                      # full dim (allowed even if not %8)
    else:
        tile_rows = (target_rows // 8) * 8
    grid = (indices.shape[0], pl.cdiv(R, tile_rows))

    # Representative _transform: invert.  Floats: 1 - x; ints: dtype_max - x.
    if jnp.issubdtype(dtype, jnp.floating):
        bound = 1.0
    else:
        bound = int(jnp.iinfo(dtype).max)

    def kernel(idx_ref, x_ref, o_ref):
        # Index selection is entirely in the BlockSpec index maps; the body is
        # a pure elementwise transform on the (1, tile_rows, 128) tile.
        del idx_ref
        o_ref[...] = (bound - x_ref[...]).astype(o_ref.dtype)

    in_spec = pl.BlockSpec((1, tile_rows, 128), lambda i, j, idx: (idx[i], j, 0))
    out_spec = pl.BlockSpec((1, tile_rows, 128), lambda i, j, idx: (idx[i], j, 0))

    out3 = pl.pallas_call(
        kernel,
        out_shape=jax.ShapeDtypeStruct((B, R, 128), dtype),
        grid_spec=pltpu.PrefetchScalarGridSpec(
            num_scalar_prefetch=1,          # indices land in SMEM
            grid=grid,
            in_specs=[in_spec],
            out_specs=out_spec,
        ),
        # Output aliases the (full) input buffer: blocks never visited by the
        # grid keep the original sample data.
        input_output_aliases={1: 0},
        compiler_params=pltpu.CompilerParams(
            dimension_semantics=("parallel", "parallel"),
        ),
    )(indices.astype(jnp.int32), x3)

    out2 = out3.reshape(B, Fp)
    if Fp != F:
        out2 = out2[:, :F]
    return out2.reshape(orig_shape)


# Clone-then-scatter semantics (PyTorch batch_inplace=False): x stays valid.
_apply_jit = jax.jit(_random_apply_impl)
# In-place semantics (batch_inplace=True): x is donated; callers must not
# reuse it afterward.
_apply_inplace_jit = jax.jit(_random_apply_impl, donate_argnums=(0,))


# --------------------------------------------------------------------------- #
# Host-side glue mirroring RandomApplyTransform's index-selection logic        #
# (pure host numpy RNG -> no device syncs on the hot path)                     #
# --------------------------------------------------------------------------- #
def _get_indices_transform(p: float, batch_size: int,
                           rng: np.random.Generator) -> np.ndarray:
    """Mirror of RandomApplyTransform._get_indices_transform (host RNG)."""
    p_mul_batch_size = p * batch_size
    floor_apply = math.floor(p_mul_batch_size)
    ceil_apply = math.ceil(p_mul_batch_size)
    if floor_apply == 0 or ceil_apply == 0:
        num_transform = 1 if rng.random() < p else 0
    elif floor_apply == ceil_apply:
        num_transform = floor_apply
    else:
        decimal = p_mul_batch_size % 1
        num_transform = floor_apply if decimal < rng.random() else ceil_apply

    if num_transform == 0:
        return np.zeros((0,), dtype=np.int32)
    if num_transform == 1:
        return rng.integers(0, batch_size, size=(1,)).astype(np.int32)
    return rng.permutation(batch_size)[:num_transform].astype(np.int32)


def random_apply_transform_forward(
    x: jax.Array,
    *,
    p: float = 0.5,
    batch_transform: bool = True,
    batch_inplace: bool = False,
    rng: Optional[np.random.Generator] = None,
) -> jax.Array:
    """Forward pass of RandomApplyTransform for a single NCHW tensor input."""
    if not 0.0 <= p <= 1.0:
        raise ValueError("`p` should be a floating point value in [0.0, 1.0].")
    if rng is None:
        rng = np.random.default_rng(0)

    B = x.shape[0]
    apply_fn = _apply_inplace_jit if batch_inplace else _apply_jit

    if not batch_transform:
        # forward_single: apply to the whole input or not at all.
        if p == 0.0:
            return x
        if p < 1.0 and rng.random() >= p:
            return x
        return apply_fn(x, jnp.arange(B, dtype=jnp.int32))

    # forward_batch
    if p == 0.0:
        return x
    if p == 1.0:
        indices = np.arange(B, dtype=np.int32)
    else:
        indices = _get_indices_transform(p, B, rng)
        if indices.shape[0] == 0:
            return x
    return apply_fn(x, jnp.asarray(indices))


# --------------------------------------------------------------------------- #
# Main                                                                         #
# --------------------------------------------------------------------------- #
if __name__ == "__main__":
    key = jax.random.PRNGKey(0)
    B, C, H, W = 2, 4, 16, 16
    x = jax.random.uniform(key, (B, C, H, W), dtype=jnp.float32)

    # --- batch mode, p = 0.5 (p*B = 1 -> exactly one sample transformed) ----
    seed = 1234
    out = random_apply_transform_forward(
        x, p=0.5, batch_transform=True, rng=np.random.default_rng(seed)
    )
    out = jax.block_until_ready(out)

    # Pure-JAX reference, replaying the same host RNG decisions.
    idx_ref = _get_indices_transform(0.5, B, np.random.default_rng(seed))
    mask = np.zeros((B,), dtype=bool)
    mask[idx_ref] = True
    ref = jnp.where(jnp.asarray(mask)[:, None, None, None], 1.0 - x, x)

    assert out.shape == x.shape and out.dtype == x.dtype
    assert jnp.allclose(out, ref, atol=1e-6), "mismatch vs reference (p=0.5)"

    # --- p = 1.0: every sample transformed ----------------------------------
    out_all = jax.block_until_ready(
        random_apply_transform_forward(x, p=1.0, batch_transform=True)
    )
    assert jnp.allclose(out_all, 1.0 - x, atol=1e-6), "mismatch (p=1.0)"

    # --- p = 0.0: identity passthrough ---------------------------------------
    out_none = random_apply_transform_forward(x, p=0.0, batch_transform=True)
    assert jnp.allclose(out_none, x), "mismatch (p=0.0)"

    # --- single mode (batch_transform=False), p = 1.0 ------------------------
    out_single = jax.block_until_ready(
        random_apply_transform_forward(x, p=1.0, batch_transform=False)
    )
    assert jnp.allclose(out_single, 1.0 - x, atol=1e-6), "mismatch (single)"

    print("KERNEL_OK")
</pallas_src>

<mosaic_0001>
module attributes {stable_mosaic.version = 11 : i64} {
  func.func @kernel(%arg0: i32, %arg1: i32, %arg2: memref<1xi32, #tpu.memory_space<smem>>, %arg3: memref<1x8x128xf32, #tpu.memory_space<vmem>>, %arg4: memref<1x8x128xf32, #tpu.memory_space<vmem>>) attributes {dimension_semantics = [#tpu.dimension_semantics<parallel>, #tpu.dimension_semantics<parallel>], iteration_bounds = array<i64: 1, 1>, scalar_prefetch = 1 : i64, scratch_operands = 0 : i64, tpu.core_type = #tpu.core_type<tc>, window_params = [{transform_indices = @transform_0, window_bounds = array<i64: 1, 8, 128>}, {transform_indices = @transform_1, window_bounds = array<i64: 1, 8, 128>}]} {
    %c0 = arith.constant 0 : index
    %c0_0 = arith.constant 0 : index
    %c0_1 = arith.constant 0 : index
    %0 = vector.load %arg3[%c0, %c0_0, %c0_1] : memref<1x8x128xf32, #tpu.memory_space<vmem>>, vector<1x8x128xf32>
    %cst = arith.constant 1.000000e+00 : f32
    %1 = vector.broadcast %cst : f32 to vector<1x8x128xf32>
    %2 = arith.subf %1, %0 : vector<1x8x128xf32>
    %c0_2 = arith.constant 0 : index
    %c0_3 = arith.constant 0 : index
    %c0_4 = arith.constant 0 : index
    %3 = vector.load %arg4[%c0_2, %c0_3, %c0_4] : memref<1x8x128xf32, #tpu.memory_space<vmem>>, vector<1x8x128xf32>
    tpu.vector_store %arg4[%c0_2, %c0_3, %c0_4], %2 {strides = array<i32>} : memref<1x8x128xf32, #tpu.memory_space<vmem>>, vector<1x8x128xf32>,
    return
  }
  func.func @transform_0(%arg0: i32, %arg1: i32, %arg2: memref<1xi32, #tpu.memory_space<smem>>) -> (i32, i32, i32) {
    %0 = arith.index_cast %arg0 : i32 to index
    %1 = memref.load %arg2[%0] : memref<1xi32, #tpu.memory_space<smem>>
    %c0_i32 = arith.constant 0 : i32
    %c0_i32_0 = arith.constant 0 : i32
    return %1, %arg1, %c0_i32 : i32, i32, i32
  }
  func.func @transform_1(%arg0: i32, %arg1: i32, %arg2: memref<1xi32, #tpu.memory_space<smem>>) -> (i32, i32, i32) {
    %0 = arith.index_cast %arg0 : i32 to index
    %1 = memref.load %arg2[%0] : memref<1xi32, #tpu.memory_space<smem>>
    %c0_i32 = arith.constant 0 : i32
    %c0_i32_0 = arith.constant 0 : i32
    return %1, %arg1, %c0_i32 : i32, i32, i32
  }
}

</mosaic_0001>

<llo_original>
// kernel: _random_apply_impl.1
$region0: #{_random_apply_impl.1}
  #allocation0 [shape = 'u32[]', space=smem, size = 0x4, offset = 0x4, fixed_abs, tag = 'smem constant byte address 0x4 - core index']
  #allocation1 [shape = 'u32[144,128]{1,0:T(1,128)}', space=vmem, size = 0x12000, scoped, tag = 'internal scratch']
  #allocation2 [shape = 's32[1]{0}', space=sflag, size = 0x4, scoped, tag = 'scoped memory for _random_apply_impl.1']
  #allocation3 [shape = 's32[1]{0:T(128)S(6)}', space=smem, size = 0x200, scoped, tag = 'prefetched SMEM operand 0']
  %s0 = inlined_call_operand.<no memory space> [shape: s32[1], index: 0, kind: input, shape index: {}]
  %s1 = inlined_call_operand.vmem [shape: f32[2,8,128], index: 1, kind: input, shape index: {}, may-alias: {1,2}]
  %s2 = inlined_call_operand.vmem [shape: f32[2,8,128], index: 2, kind: output, shape index: {}, may-alias: {1,2}]
  %s3 = sld [smem:[#allocation0]]
  $region14: #{_random_apply_impl.1} parent=0
    _
  %s5 = ssub.s32 1, %s3
  %s6 = scalar_select 0, %s5, %s3
  %7 = sst [smem:[#allocation3]] %s0
  // Predicated region
  $region2: #{_random_apply_impl.1} parent=0 // pred_check
    _
  $region3: #{_random_apply_impl.1} parent=0 // pred_check_branch
    %9 = sbr.rel (0) target = $region5
  $region4: #{_random_apply_impl.1} parent=0 // pred_region
    %s10 = sld [smem:[#allocation3]]
    %p11 = scmp.lt.s32.totalorder %s10, 1
    %s12 = scalar_select %p11, %s10, 1
    %s13 = smul.addr %s12, 8
    %s14 = scalar_lea.vmem %s1, %s13
    %s15 = sld [smem:[#allocation3]]
  $region5: #{_random_apply_impl.1} parent=0 // pred_fallthru
    _
  %s16 = sld [smem:[#allocation3]]
  %p17 = scmp.lt.s32.totalorder %s16, 1
  %s18 = scalar_select %p17, %s16, 1
  %s19 = smul.addr %s18, 8
  %s20 = scalar_lea.vmem %s1, %s19
  %s21 = sld [smem:[#allocation3]]
  %p22 = scmp.lt.s32.totalorder %s21, 1
  %s23 = scalar_select %p22, %s21, 1
  %s24 = smul.addr %s23, 8
  %s25 = scalar_lea.vmem %s2, %s24
  %s26 = sld [smem:[#allocation3]]
  %p27 = scmp.lt.s32.totalorder %s26, 1
  %s28 = scalar_select %p27, %s26, 1
  %s29 = smul.addr %s28, 8
  %s30 = scalar_lea.vmem %s1, %s29
  %s31 = sld [smem:[#allocation3]]
  %s32 = sld [smem:[#allocation3]]
  %p33 = scmp.lt.s32.totalorder %s32, 1
  %s34 = scalar_select %p33, %s32, 1
  %s35 = smul.addr %s34, 8
  %s36 = scalar_lea.vmem %s2, %s35
  %s37 = sld [smem:[#allocation3]]
  %v38 = vld [vmem:[%s30] sm:$0xff]
  %v39 = vsub.f32 1.0, %v38
  %40 = vst [vmem:[%s36] sm:$0xff] %v39
  %s41 = sld [smem:[#allocation3]]
  %p42 = scmp.lt.s32.totalorder %s41, 1
  %s43 = scalar_select %p42, %s41, 1
  %s44 = smul.addr %s43, 8
  %s45 = scalar_lea.vmem %s2, %s44
  // Predicated region
  $region6: #{_random_apply_impl.1} parent=0 // pred_check
    _
  $region7: #{_random_apply_impl.1} parent=0 // pred_check_branch
    %47 = sbr.rel (0) target = $region9
  $region8: #{_random_apply_impl.1} parent=0 // pred_region
    %s48 = sld [smem:[#allocation3]]
  $region9: #{_random_apply_impl.1} parent=0 // pred_fallthru
    _
  // Predicated region
  $region10: #{_random_apply_impl.1} parent=0 // pred_check
    _
  $region11: #{_random_apply_impl.1} parent=0 // pred_check_branch
    %50 = sbr.rel (0) target = $region13
  $region12: #{_random_apply_impl.1} parent=0 // pred_region
    %s51 = sld [smem:[#allocation3]]
    %p52 = scmp.lt.s32.totalorder %s51, 1
    %s53 = scalar_select %p52, %s51, 1
    %s54 = smul.addr %s53, 8
    %s55 = scalar_lea.vmem %s2, %s54
  $region13: #{_random_apply_impl.1} parent=0 // pred_fallthru
    _

</llo_original>
